<compile_context>
chip_gen: v5e
topology: v5e:2x2
jax: 0.10.0
libtpu: 0.0.40
codegen_flags: <defaults>
</compile_context>

<pallas_src>
import functools

import jax
import jax.numpy as jnp
from jax import lax
from jax.experimental import pallas as pl
from jax.experimental.pallas import tpu as pltpu


def _round_up(x, m):
    return ((x + m - 1) // m) * m


def _cdiv(a, b):
    return (a + b - 1) // b


def _focal_kernel(logits_ref, tgt_ref, alpha_ref, out_ref, acc_ref,
                  *, gamma, n_total, tile_n, steps_per_split):
    p = pl.program_id(0)              # split index ("parallel", v7x megacore)
    i = pl.program_id(1)              # step within split ("arbitrary")
    blk = p * steps_per_split + i     # global column-block index

    @pl.when(i == 0)
    def _():
        acc_ref[...] = jnp.zeros_like(acc_ref)

    x = logits_ref[...].astype(jnp.float32)   # (C, TN) class on sublanes
    t = tgt_ref[...]                          # (1, TN) int32
    a = alpha_ref[...].astype(jnp.float32)    # (C, 1)

    cls = lax.broadcasted_iota(jnp.int32, x.shape, 0)   # class id per sublane
    onehot = cls == t                                   # (C, TN)

    # Numerically stable cross-entropy per column (reduce over sublane axis).
    m = jnp.max(x, axis=0, keepdims=True)               # (1, TN)
    e = jnp.exp(x - m)                                  # (C, TN)
    sum_e = jnp.sum(e, axis=0, keepdims=True)           # (1, TN)
    x_t = jnp.sum(jnp.where(onehot, x, 0.0), axis=0, keepdims=True)

    ce = m + jnp.log(sum_e) - x_t                       # (1, TN)
    # pt from the already-stable ce on the EUP slot; avoids the second
    # one-hot select + sublane reduce + divide of e_t / sum_e.
    pt = jnp.exp(-ce)

    one_minus_pt = 1.0 - pt
    if isinstance(gamma, int) and gamma >= 0:
        # integer gamma: explicit multiplies, no pow -> exp(log()) lowering
        mod = jnp.ones_like(one_minus_pt)
        for _ in range(gamma):
            mod = mod * one_minus_pt
    else:
        mod = one_minus_pt ** gamma

    alpha_t = jnp.sum(jnp.where(onehot, a, 0.0), axis=0, keepdims=True)
    focal = alpha_t * mod * ce                           # (1, TN)

    # Ragged-tail mask, hoisted out of the hot path: only blocks that overhang
    # N (the genuine tail block, or a clamp-duplicated block on the 2nd split)
    # take the masked branch; full interior blocks accumulate unconditionally.
    n_full_blocks = n_total // tile_n
    is_full = blk < n_full_blocks

    @pl.when(is_full)
    def _():
        acc_ref[...] += focal

    @pl.when(jnp.logical_not(is_full))
    def _():
        col = blk * tile_n + lax.broadcasted_iota(jnp.int32, focal.shape, 1)
        acc_ref[...] += jnp.where(col < n_total, focal, 0.0)

    @pl.when(i == pl.num_programs(1) - 1)
    def _():
        out_ref[0, 0] = jnp.sum(acc_ref[...])


def balanced_focal_loss(logits, targets, alpha=None, gamma=2,
                        reduction='mean', tile_n=None):
    """logits: [N, C], targets: [N] int, alpha: [C] or None -> scalar f32.

    Matches BalancedFocalLoss.forward for reduction in {'mean', 'sum'}.
    """
    # TODO(synk): reduction='none' (per-element output) is not implemented.
    assert reduction in ('mean', 'sum')
    n, c = logits.shape

    # ----- generation-aware VMEM budgeting -----
    try:
        vmem_cap = int(pltpu.get_tpu_info().vmem_capacity_bytes)
    except Exception:  # pragma: no cover - conservative fallback (v7x per-TC)
        vmem_cap = 64 * 1024 * 1024

    itemsize = jnp.dtype(logits.dtype).itemsize
    # budget for the double-buffered logits blocks, leaving ample headroom
    in_budget = min(24 * 1024 * 1024, vmem_cap // 5)
    max_tile = max(128, (in_budget // (2 * c * itemsize)) // 128 * 128)

    # ----- tile sizing: large lane-dense tiles to amortize grid-step overhead -----
    if tile_n is None:
        tile_n = 16384
    tile_n = max(128, (tile_n // 128) * 128)
    tile_n = min(tile_n, max_tile)
    tile_n = min(tile_n, _round_up(n, 128))   # never bigger than needed

    total_steps = _cdiv(n, tile_n)
    num_splits = 2 if total_steps >= 2 else 1     # v7x: 2 TCs; harmless on 1-TC chips
    steps_per_split = _cdiv(total_steps, num_splits)

    # ----- layout plumbing: class -> sublanes, N -> lanes (lane-dense) -----
    # No padding pass (the in-kernel mask covers the non-dividing last block);
    # dtype is preserved (bf16 logits stay bf16 on the HBM read, f32 upcast in
    # the kernel).
    # TODO(synk): fold this [N,C]->[C,N] relayout into the kernel (in-kernel
    # XLU transpose of native (tile_n, C) blocks) to remove the remaining
    # wrapper-side HBM pass over the logits.
    logits_t = jnp.swapaxes(logits, 0, 1)               # (C, N)
    tgt2d = targets.astype(jnp.int32).reshape(1, n)     # free reshape, no pad

    if alpha is None:
        alpha2d = jnp.ones((c, 1), jnp.float32)
    else:
        alpha2d = jnp.asarray(alpha, jnp.float32).reshape(c, 1)

    kernel = functools.partial(
        _focal_kernel, gamma=gamma, n_total=n, tile_n=tile_n,
        steps_per_split=steps_per_split)

    def blk_idx(p_, i_):
        # clamp so a duplicated block on the second split never reads OOB;
        # its contribution is zeroed by the in-kernel mask.
        return jnp.minimum(p_ * steps_per_split + i_, total_steps - 1)

    partials = pl.pallas_call(
        kernel,
        out_shape=jax.ShapeDtypeStruct((num_splits, 1), jnp.float32),
        grid_spec=pltpu.PrefetchScalarGridSpec(
            num_scalar_prefetch=0,
            grid=(num_splits, steps_per_split),
            in_specs=[
                pl.BlockSpec((c, tile_n), lambda p_, i_: (0, blk_idx(p_, i_))),
                pl.BlockSpec((1, tile_n), lambda p_, i_: (0, blk_idx(p_, i_))),
                pl.BlockSpec((c, 1), lambda p_, i_: (0, 0)),
            ],
            out_specs=pl.BlockSpec((1, 1), lambda p_, i_: (p_, 0),
                                   memory_space=pltpu.MemorySpace.SMEM),
            scratch_shapes=[pltpu.VMEM((1, tile_n), jnp.float32)],
        ),
        compiler_params=pltpu.CompilerParams(
            dimension_semantics=("parallel", "arbitrary"),
            vmem_limit_bytes=min(vmem_cap, 128 * 1024 * 1024) // 2,
        ),
    )(logits_t, tgt2d, alpha2d)

    total = jnp.sum(partials)
    if reduction == 'mean':
        total = total / jnp.float32(n)
    return total


def _reference(logits, targets, alpha, gamma=2):
    logp = jax.nn.log_softmax(logits.astype(jnp.float32), axis=-1)
    ce = -jnp.take_along_axis(logp, targets[:, None], axis=-1)[:, 0]
    pt = jnp.exp(-ce)
    focal = (1.0 - pt) ** gamma * ce
    alpha_t = alpha[targets]
    return jnp.mean(alpha_t * focal)


if __name__ == "__main__":
    key = jax.random.PRNGKey(0)
    N, C = 200, 8            # ragged N: exercises the lane mask
    k1, k2 = jax.random.split(key)

    logits = jax.random.normal(k1, (N, C), dtype=jnp.float32)
    targets = jax.random.randint(k2, (N,), 0, C, dtype=jnp.int32)
    alpha = jnp.linspace(0.25, 1.0, C, dtype=jnp.float32)

    ref = _reference(logits, targets, alpha, gamma=2)

    # default large tile: single block, single split
    loss = jax.block_until_ready(
        balanced_focal_loss(logits, targets, alpha, gamma=2))
    assert jnp.allclose(loss, ref, rtol=1e-4, atol=1e-6), (loss, ref)

    # small tile: multi-block, 2-way split, ragged tail in the second split
    loss_mb = jax.block_until_ready(
        balanced_focal_loss(logits, targets, alpha, gamma=2, tile_n=128))
    assert jnp.allclose(loss_mb, ref, rtol=1e-4, atol=1e-6), (loss_mb, ref)

    # sum reduction
    loss_sum = jax.block_until_ready(
        balanced_focal_loss(logits, targets, alpha, gamma=2,
                            reduction='sum', tile_n=128))
    assert jnp.allclose(loss_sum, ref * N, rtol=1e-4, atol=1e-4), (loss_sum, ref * N)

    # alpha=None path (focal loss without class weighting)
    loss_na = jax.block_until_ready(
        balanced_focal_loss(logits, targets, None, gamma=2, tile_n=128))
    ref_na = _reference(logits, targets, jnp.ones((C,), jnp.float32), gamma=2)
    assert jnp.allclose(loss_na, ref_na, rtol=1e-4, atol=1e-6), (loss_na, ref_na)

    print("KERNEL_OK")
</pallas_src>

<mosaic_0001>
module attributes {stable_mosaic.version = 11 : i64} {
  func.func @_focal_kernel(%arg0: i32, %arg1: i32, %arg2: memref<8x256xf32, #tpu.memory_space<vmem>>, %arg3: memref<1x256xi32, #tpu.memory_space<vmem>>, %arg4: memref<8x1xf32, #tpu.memory_space<vmem>>, %arg5: memref<1x1xf32, #tpu.memory_space<smem>>, %arg6: memref<1x256xf32, #tpu.memory_space<vmem>>) attributes {dimension_semantics = [#tpu.dimension_semantics<parallel>, #tpu.dimension_semantics<arbitrary>], iteration_bounds = array<i64: 1, 1>, scalar_prefetch = 0 : i64, scratch_operands = 1 : i64, tpu.core_type = #tpu.core_type<tc>, window_params = [{transform_indices = @transform_0, window_bounds = array<i64: 8, 256>}, {transform_indices = @transform_1, window_bounds = array<i64: 1, 256>}, {pipeline_mode = #tpu.pipeline_mode<synchronous>, transform_indices = @transform_2, window_bounds = array<i64: 8, 1>}, {transform_indices = @transform_3, window_bounds = array<i64: 1, 1>}]} {
    %c1_i32 = arith.constant 1 : i32
    %0 = arith.muli %arg0, %c1_i32 : i32
    %1 = arith.addi %0, %arg1 : i32
    %c0_i32 = arith.constant 0 : i32
    %2 = arith.cmpi eq, %arg1, %c0_i32 : i32
    %3 = arith.extui %2 : i1 to i32
    %c0_i32_0 = arith.constant 0 : i32
    %4 = arith.cmpi ne, %3, %c0_i32_0 : i32
    scf.if %4 {
      %cst_19 = arith.constant 0.000000e+00 : f32
      %50 = vector.broadcast %cst_19 : f32 to vector<1x256xf32>
      %c0_20 = arith.constant 0 : index
      %c0_21 = arith.constant 0 : index
      %51 = vector.load %arg6[%c0_20, %c0_21] : memref<1x256xf32, #tpu.memory_space<vmem>>, vector<1x256xf32>
      tpu.vector_store %arg6[%c0_20, %c0_21], %50 {strides = array<i32>} : memref<1x256xf32, #tpu.memory_space<vmem>>, vector<1x256xf32>,
    } else {
    }
    %c0 = arith.constant 0 : index
    %c0_1 = arith.constant 0 : index
    %5 = vector.load %arg2[%c0, %c0_1] : memref<8x256xf32, #tpu.memory_space<vmem>>, vector<8x256xf32>
    %c0_2 = arith.constant 0 : index
    %c0_3 = arith.constant 0 : index
    %6 = vector.load %arg3[%c0_2, %c0_3] : memref<1x256xi32, #tpu.memory_space<vmem>>, vector<1x256xi32>
    %c0_4 = arith.constant 0 : index
    %c0_5 = arith.constant 0 : index
    %7 = vector.load %arg4[%c0_4, %c0_5] : memref<8x1xf32, #tpu.memory_space<vmem>>, vector<8x1xf32>
    %8 = tpu.iota {dimensions = array<i32: 0>} : vector<8x256xi32>
    %9 = vector.broadcast %6 : vector<1x256xi32> to vector<8x256xi32>
    %10 = arith.cmpi eq, %8, %9 : vector<8x256xi32>
    %cst = arith.constant dense<0xFF800000> : vector<256xf32>
    %11 = vector.multi_reduction <maximumf>, %5, %cst [0] : vector<8x256xf32> to vector<256xf32>
    %12 = vector.shape_cast %11 : vector<256xf32> to vector<1x256xf32>
    %13 = vector.broadcast %12 : vector<1x256xf32> to vector<8x256xf32>
    %14 = arith.subf %5, %13 : vector<8x256xf32>
    %15 = math.exp %14 : vector<8x256xf32>
    %cst_6 = arith.constant dense<0.000000e+00> : vector<256xf32>
    %16 = vector.multi_reduction <add>, %15, %cst_6 [0] : vector<8x256xf32> to vector<256xf32>
    %17 = vector.shape_cast %16 : vector<256xf32> to vector<1x256xf32>
    %cst_7 = arith.constant 0.000000e+00 : f32
    %18 = vector.broadcast %cst_7 : f32 to vector<8x256xf32>
    %19 = arith.select %10, %5, %18 : vector<8x256xi1>, vector<8x256xf32>
    %cst_8 = arith.constant dense<0.000000e+00> : vector<256xf32>
    %20 = vector.multi_reduction <add>, %19, %cst_8 [0] : vector<8x256xf32> to vector<256xf32>
    %21 = vector.shape_cast %20 : vector<256xf32> to vector<1x256xf32>
    %22 = math.log %17 : vector<1x256xf32>
    %23 = arith.addf %12, %22 : vector<1x256xf32>
    %24 = arith.subf %23, %21 : vector<1x256xf32>
    %cst_9 = arith.constant 0.000000e+00 : f32
    %25 = vector.broadcast %cst_9 : f32 to vector<1x256xf32>
    %26 = arith.subf %25, %24 : vector<1x256xf32>
    %27 = math.exp %26 : vector<1x256xf32>
    %cst_10 = arith.constant 1.000000e+00 : f32
    %28 = vector.broadcast %cst_10 : f32 to vector<1x256xf32>
    %29 = arith.subf %28, %27 : vector<1x256xf32>
    %cst_11 = arith.constant 1.000000e+00 : f32
    %30 = vector.broadcast %cst_11 : f32 to vector<1x256xf32>
    %31 = arith.mulf %30, %29 : vector<1x256xf32>
    %32 = arith.mulf %31, %29 : vector<1x256xf32>
    %cst_12 = arith.constant 0.000000e+00 : f32
    %33 = vector.shape_cast %7 : vector<8x1xf32> to vector<8x1xf32>
    %34 = vector.broadcast %33 : vector<8x1xf32> to vector<8x256xf32>
    %35 = vector.broadcast %cst_12 : f32 to vector<8x256xf32>
    %36 = arith.select %10, %34, %35 : vector<8x256xi1>, vector<8x256xf32>
    %cst_13 = arith.constant dense<0.000000e+00> : vector<256xf32>
    %37 = vector.multi_reduction <add>, %36, %cst_13 [0] : vector<8x256xf32> to vector<256xf32>
    %38 = vector.shape_cast %37 : vector<256xf32> to vector<1x256xf32>
    %39 = arith.mulf %38, %32 : vector<1x256xf32>
    %40 = arith.mulf %39, %24 : vector<1x256xf32>
    %c0_i32_14 = arith.constant 0 : i32
    %41 = arith.cmpi slt, %1, %c0_i32_14 : i32
    %42 = arith.extui %41 : i1 to i32
    %c0_i32_15 = arith.constant 0 : i32
    %43 = arith.cmpi ne, %42, %c0_i32_15 : i32
    scf.if %43 {
      %c0_19 = arith.constant 0 : index
      %c0_20 = arith.constant 0 : index
      %50 = vector.load %arg6[%c0_19, %c0_20] : memref<1x256xf32, #tpu.memory_space<vmem>>, vector<1x256xf32>
      %51 = arith.addf %50, %40 : vector<1x256xf32>
      %c0_21 = arith.constant 0 : index
      %c0_22 = arith.constant 0 : index
      %52 = vector.load %arg6[%c0_21, %c0_22] : memref<1x256xf32, #tpu.memory_space<vmem>>, vector<1x256xf32>
      tpu.vector_store %arg6[%c0_21, %c0_22], %51 {strides = array<i32>} : memref<1x256xf32, #tpu.memory_space<vmem>>, vector<1x256xf32>,
    } else {
    }
    %true = arith.constant true
    %44 = arith.xori %41, %true : i1
    %45 = arith.extui %44 : i1 to i32
    %c0_i32_16 = arith.constant 0 : i32
    %46 = arith.cmpi ne, %45, %c0_i32_16 : i32
    scf.if %46 {
      %c256_i32 = arith.constant 256 : i32
      %50 = arith.muli %1, %c256_i32 : i32
      %51 = tpu.iota {dimensions = array<i32: 1>} : vector<1x256xi32>
      %52 = vector.broadcast %50 : i32 to vector<1x256xi32>
      %53 = arith.addi %52, %51 : vector<1x256xi32>
      %c0_19 = arith.constant 0 : index
      %c0_20 = arith.constant 0 : index
      %54 = vector.load %arg6[%c0_19, %c0_20] : memref<1x256xf32, #tpu.memory_space<vmem>>, vector<1x256xf32>
      %c200_i32 = arith.constant 200 : i32
      %55 = vector.broadcast %c200_i32 : i32 to vector<1x256xi32>
      %56 = arith.cmpi slt, %53, %55 : vector<1x256xi32>
      %cst_21 = arith.constant 0.000000e+00 : f32
      %57 = vector.broadcast %cst_21 : f32 to vector<1x256xf32>
      %58 = arith.select %56, %40, %57 : vector<1x256xi1>, vector<1x256xf32>
      %59 = arith.addf %54, %58 : vector<1x256xf32>
      %c0_22 = arith.constant 0 : index
      %c0_23 = arith.constant 0 : index
      %60 = vector.load %arg6[%c0_22, %c0_23] : memref<1x256xf32, #tpu.memory_space<vmem>>, vector<1x256xf32>
      tpu.vector_store %arg6[%c0_22, %c0_23], %59 {strides = array<i32>} : memref<1x256xf32, #tpu.memory_space<vmem>>, vector<1x256xf32>,
    } else {
    }
    %c0_i32_17 = arith.constant 0 : i32
    %47 = arith.cmpi eq, %arg1, %c0_i32_17 : i32
    %48 = arith.extui %47 : i1 to i32
    %c0_i32_18 = arith.constant 0 : i32
    %49 = arith.cmpi ne, %48, %c0_i32_18 : i32
    scf.if %49 {
      %c0_19 = arith.constant 0 : index
      %c0_20 = arith.constant 0 : index
      %50 = vector.load %arg6[%c0_19, %c0_20] : memref<1x256xf32, #tpu.memory_space<vmem>>, vector<1x256xf32>
      %51 = vector.shape_cast %50 : vector<1x256xf32> to vector<1x1x256xf32>
      %cst_21 = arith.constant dense<0.000000e+00> : vector<1xf32>
      %52 = vector.multi_reduction <add>, %51, %cst_21 [1, 2] : vector<1x1x256xf32> to vector<1xf32>
      %53 = vector.shape_cast %52 : vector<1xf32> to vector<1x1x1xf32>
      %54 = vector.extract %53[0, 0, 0] : f32 from vector<1x1x1xf32>
      %c0_22 = arith.constant 0 : index
      %c0_23 = arith.constant 0 : index
      %55 = memref.load %arg5[%c0_22, %c0_23] : memref<1x1xf32, #tpu.memory_space<smem>>
      memref.store %54, %arg5[%c0_22, %c0_23] : memref<1x1xf32, #tpu.memory_space<smem>>
    } else {
    }
    return
  }
  func.func @transform_0(%arg0: i32, %arg1: i32) -> (i32, i32) {
    %c1_i32 = arith.constant 1 : i32
    %0 = arith.muli %arg0, %c1_i32 : i32
    %1 = arith.addi %0, %arg1 : i32
    %c0_i32 = arith.constant 0 : i32
    %2 = arith.minsi %1, %c0_i32 : i32
    %c0_i32_0 = arith.constant 0 : i32
    %c0_i32_1 = arith.constant 0 : i32
    return %c0_i32_0, %2 : i32, i32
  }
  func.func @transform_1(%arg0: i32, %arg1: i32) -> (i32, i32) {
    %c1_i32 = arith.constant 1 : i32
    %0 = arith.muli %arg0, %c1_i32 : i32
    %1 = arith.addi %0, %arg1 : i32
    %c0_i32 = arith.constant 0 : i32
    %2 = arith.minsi %1, %c0_i32 : i32
    %c0_i32_0 = arith.constant 0 : i32
    %c0_i32_1 = arith.constant 0 : i32
    return %c0_i32_0, %2 : i32, i32
  }
  func.func @transform_2(%arg0: i32, %arg1: i32) -> (i32, i32) {
    %c0_i32 = arith.constant 0 : i32
    %c0_i32_0 = arith.constant 0 : i32
    %c0_i32_1 = arith.constant 0 : i32
    return %c0_i32, %c0_i32_0 : i32, i32
  }
  func.func @transform_3(%arg0: i32, %arg1: i32) -> (i32, i32) {
    %c0_i32 = arith.constant 0 : i32
    %c0_i32_0 = arith.constant 0 : i32
    return %arg0, %c0_i32 : i32, i32
  }
}

</mosaic_0001>

<llo_original>
// kernel: tpu_custom_call.1
$region0: #{tpu_custom_call.1}
  #allocation0 [shape = 'u32[]', space=smem, size = 0x4, offset = 0x4, fixed_abs, tag = 'smem constant byte address 0x4 - core index']
  #allocation1 [shape = 'u32[72,128]{1,0:T(1,128)}', space=vmem, size = 0x9000, scoped, tag = 'internal scratch']
  #allocation2 [shape = 'f32[1,256]{1,0:T(1,128)}', space=vmem, size = 0x400, scoped, tag = 'scratch operand']
  %s0 = inlined_call_operand.hbm [shape: f32[8,200], index: 0, kind: input, shape index: {}]
  %s1 = inlined_call_operand.vmem [shape: s32[1,200], index: 1, kind: input, shape index: {}]
  %s2 = inlined_call_operand.vmem [shape: f32[8,1], index: 2, kind: input, shape index: {}]
  %s3 = inlined_call_operand.hbm [shape: f32[1,1], index: 3, kind: output, shape index: {}]
  %s4 = sld [smem:[#allocation0]]
  $region42: #{tpu_custom_call.1} parent=0
    _
  %s6 = ssub.s32 1, %s4
  %s7 = scalar_select 0, %s6, %s4
  $region1: #{tpu_custom_call.1} parent=0
    #allocation3 [shape = 'u8[8192]{0}', space=vmem, size = 0x2000, scoped, tag = 'input window, operand 0, single buffered']
    #allocation4 [shape = 's32[1]{0}', space=sflag, size = 0x4, scoped, tag = 'scoped memory for tpu_custom_call.1']
    #allocation5 [shape = 's32[1]{0}', space=sflag, size = 0x4, scoped, tag = 'scoped memory for tpu_custom_call.1']
    #allocation6 [shape = 'u8[512]{0}', space=smem, size = 0x200, scoped, tag = 'output window, operand 0, single buffered']
    %8 = vsyncpa [#allocation4], 0
    %9 = vsyncpa [#allocation5], 0
    // Predicated region
    $region2: #{tpu_custom_call.1} parent=1 // pred_check
      _
    $region3: #{tpu_custom_call.1} parent=1 // pred_check_branch
      %11 = sbr.rel (0) target = $region5
    $region4: #{tpu_custom_call.1} parent=1 // pred_region
      %s12 = sadd.s32 0, 0
      %p13 = scmp.lt.s32.totalorder %s12, 0
      %s14 = scalar_select %p13, %s12, 0
      %s15 = smul.u32 2, %s14
      %17 = vsyncadd [#allocation4], 0
      %s18 = smul.addr %s15, 8
      %s19 = scalar_lea.hbm %s0, %s18
      %s21 = sshll.u32 %s19, 4
      %s22 = int_to_ptr.hbm [resolvable:$true] %s21
      %s23 = sshll.u32 [#allocation3], 4
      %s24 = int_to_ptr.vmem [resolvable:$true] %s23
      %26 = dma.hbm_to_vmem [thread:$0]  %s22, 256, %s24, [#allocation4]
    $region5: #{tpu_custom_call.1} parent=1 // pred_fallthru
      _
    // Predicated region
    $region6: #{tpu_custom_call.1} parent=1 // pred_check
      _
    $region7: #{tpu_custom_call.1} parent=1 // pred_check_branch
      %28 = sbr.rel (0) target = $region9
    $region8: #{tpu_custom_call.1} parent=1 // pred_region
      %s29 = sadd.s32 0, 0
      %p30 = scmp.lt.s32.totalorder %s29, 0
      %s31 = scalar_select %p30, %s29, 0
      %s32 = smul.u32 2, %s31
      %p33 = scmp.lt.s32.totalorder %s32, 1
      %s34 = scalar_select %p33, %s32, 1
      %s35 = scalar_lea.vmem %s1, %s34
      %s36 = sadd.s32 0, 0
      %p37 = scmp.lt.s32.totalorder %s36, 0
      %s38 = scalar_select %p37, %s36, 0
      %s39 = smul.u32 2, %s38
    $region9: #{tpu_custom_call.1} parent=1 // pred_fallthru
      _
    // Predicated region
    $region10: #{tpu_custom_call.1} parent=1 // pred_check
      _
    $region11: #{tpu_custom_call.1} parent=1 // pred_check_branch
      %41 = sbr.rel (0) target = $region13
    $region12: #{tpu_custom_call.1} parent=1 // pred_region
      _
    $region13: #{tpu_custom_call.1} parent=1 // pred_fallthru
      _
    // Predicated region
    $region14: #{tpu_custom_call.1} parent=1 // pred_check
      _
    $region15: #{tpu_custom_call.1} parent=1 // pred_check_branch
      %43 = sbr.rel (0) target = $region17
    $region16: #{tpu_custom_call.1} parent=1 // pred_region
      %45 = dma.done [#allocation4], 256
    $region17: #{tpu_custom_call.1} parent=1 // pred_fallthru
      _
    %s46 = sadd.s32 0, 0
    %p47 = scmp.lt.s32.totalorder %s46, 0
    %s48 = scalar_select %p47, %s46, 0
    %s49 = smul.u32 2, %s48
    %p50 = scmp.lt.s32.totalorder %s49, 1
    %s51 = scalar_select %p50, %s49, 1
    %s52 = scalar_lea.vmem %s1, %s51
    %s53 = sadd.s32 0, 0
    %p54 = scmp.lt.s32.totalorder %s53, 0
    %s55 = scalar_select %p54, %s53, 0
    %s56 = smul.u32 2, %s55
    %s57 = sadd.s32 0, 0
    %p58 = scmp.lt.s32.totalorder %s57, 0
    %s59 = scalar_select %p58, %s57, 0
    %s60 = smul.u32 2, %s59
    %p61 = scmp.lt.s32.totalorder %s60, 1
    %s62 = scalar_select %p61, %s60, 1
    %s63 = scalar_lea.vmem %s1, %s62
    %s64 = sadd.s32 0, 0
    %p65 = scmp.lt.s32.totalorder %s64, 0
    %s66 = scalar_select %p65, %s64, 0
    %s67 = smul.u32 2, %s66
    %s68 = sadd.s32 0, 0
    %p69 = scmp.eq.s32.totalorder 0, 0
    // Predicated region
    $region18: #{tpu_custom_call.1} parent=1 // pred_check
      %p70 = pneg %p69
    $region19: #{tpu_custom_call.1} parent=1 // pred_check_branch
      %72 = sbr.rel (%p70) target = $region21
    $region20: #{tpu_custom_call.1} parent=1 // pred_region
      %v73 = vlaneseq
      %vm74 = vcmp.ge.s32.totalorder %v73, 0
      %vm75 = vcmp.lt.s32.totalorder %v73, 256
      %vm76 = vmand %vm74, %vm75
      %77 = vst.msk [vmem:[#allocation2] sm:$0x3] %vm76, 0.0
    $region21: #{tpu_custom_call.1} parent=1 // pred_fallthru
      _
    %v78 = vld [vmem:[#allocation3] sm:$0xff]
    %v79 = vld [vmem:[#allocation3 + $0x8] sm:$0xff]
    %v80 = vld [vmem:[%s63] sm:$0x3]
    %v81 = vld [vmem:[%s2] sm:$0xff]
    %v82 = vlaneseq
    %v83 = vshrl.u32 %v82, 7
    %v84 = vperm.slane %v80, 0
    %v85 = vperm.slane %v80, 1
    %vm86 = vcmp.eq.s32.totalorder %v83, %v84
    %vm87 = vcmp.eq.s32.totalorder %v83, %v85
    %v88 = vrot.slane %v78, 4
    %v89 = vmax.f32 %v78, %v88
    %v90 = vrot.slane %v89, 2
    %v91 = vmax.f32 %v89, %v90
    %v92 = vrot.slane %v91, 1
    %v93 = vmax.f32 %v91, %v92
    %v94 = vrot.slane %v79, 4
    %v95 = vmax.f32 %v79, %v94
    %v96 = vrot.slane %v95, 2
    %v97 = vmax.f32 %v95, %v96
    %v98 = vrot.slane %v97, 1
    %v99 = vmax.f32 %v97, %v98
    %v100 = vsub.f32 %v78, %v93
    %v101 = vsub.f32 %v79, %v99
    %v102 = vmul.f32 %v100, 1.442695
    %v103 = vpow.pop %v102
    %v104 = vmul.f32 %v101, 1.442695
    %v105 = vpow.pop %v104
    %v106 = vrot.slane %v103, 4
    %v107 = vadd.f32 %v103, %v106
    %v108 = vrot.slane %v107, 2
    %v109 = vadd.f32 %v107, %v108
    %v110 = vrot.slane %v109, 1
    %v111 = vadd.f32 %v109, %v110
    %v112 = vrot.slane %v105, 4
    %v113 = vadd.f32 %v105, %v112
    %v114 = vrot.slane %v113, 2
    %v115 = vadd.f32 %v113, %v114
    %v116 = vrot.slane %v115, 1
    %v117 = vadd.f32 %v115, %v116
    %v118 = vsel %vm86, %v78, 0.0
    %v119 = vsel %vm87, %v79, 0.0
    %v120 = vrot.slane %v118, 4
    %v121 = vadd.f32 %v118, %v120
    %v122 = vrot.slane %v121, 2
    %v123 = vadd.f32 %v121, %v122
    %v124 = vrot.slane %v123, 1
    %v125 = vadd.f32 %v123, %v124
    %v126 = vrot.slane %v119, 4
    %v127 = vadd.f32 %v119, %v126
    %v128 = vrot.slane %v127, 2
    %v129 = vadd.f32 %v127, %v128
    %v130 = vrot.slane %v129, 1
    %v131 = vadd.f32 %v129, %v130
    %v132 = vlog2.pop %v111
    %v133 = vmul.f32 %v132, 0.6931472
    %v134 = vlog2.pop %v117
    %v135 = vmul.f32 %v134, 0.6931472
    %v136 = vadd.f32 %v93, %v133
    %v137 = vadd.f32 %v99, %v135
    %v138 = vsub.f32 %v136, %v125
    %v139 = vsub.f32 %v137, %v131
    %v140 = vsub.f32 0.0, %v138
    %v141 = vsub.f32 0.0, %v139
    %v142 = vmul.f32 %v140, 1.442695
    %v143 = vpow.pop %v142
    %v144 = vmul.f32 %v141, 1.442695
    %v145 = vpow.pop %v144
    %v146 = vsub.f32 1.0, %v143
    %v147 = vsub.f32 1.0, %v145
    %v148 = vmul.f32 %v146, %v146
    %v149 = vmul.f32 %v147, %v147
    %151 = vset.pattern.permute.xlu0 0
    %152 = vperm.xlu0 %151, %v81
    %v153 = vpop.permute.xlu0 %152
    %v155 = vsel %vm86, %v153, 0.0
    %v156 = vsel %vm87, %v153, 0.0
    %v157 = vrot.slane %v155, 4
    %v158 = vadd.f32 %v155, %v157
    %v159 = vrot.slane %v158, 2
    %v160 = vadd.f32 %v158, %v159
    %v161 = vrot.slane %v160, 1
    %v162 = vadd.f32 %v160, %v161
    %v163 = vrot.slane %v156, 4
    %v164 = vadd.f32 %v156, %v163
    %v165 = vrot.slane %v164, 2
    %v166 = vadd.f32 %v164, %v165
    %v167 = vrot.slane %v166, 1
    %v168 = vadd.f32 %v166, %v167
    %v169 = vmul.f32 %v162, %v148
    %v170 = vmul.f32 %v168, %v149
    %v171 = vmul.f32 %v169, %v138
    %v172 = vmul.f32 %v170, %v139
    %p173 = scmp.lt.s32.totalorder %s68, 0
    // Predicated region
    $region22: #{tpu_custom_call.1} parent=1 // pred_check
      %p174 = pneg %p173
    $region23: #{tpu_custom_call.1} parent=1 // pred_check_branch
      %176 = sbr.rel (%p174) target = $region25
    $region24: #{tpu_custom_call.1} parent=1 // pred_region
      %v177 = vld [vmem:[#allocation2] sm:$0x3]
      %v180 = vrot.slane %v172, 7
      %vm181 = vcmask 1040384
      %v182 = vsel %vm181, %v171, %v180
      %v184 = vadd.f32 %v177, %v182
      %v185 = vlaneseq
      %vm186 = vcmp.ge.s32.totalorder %v185, 0
      %vm187 = vcmp.lt.s32.totalorder %v185, 256
      %vm188 = vmand %vm186, %vm187
      %189 = vst.msk [vmem:[#allocation2] sm:$0x3] %vm188, %v184
    $region25: #{tpu_custom_call.1} parent=1 // pred_fallthru
      _
    %p190 = scmp.ge.s32.totalorder %s68, 0
    // Predicated region
    $region26: #{tpu_custom_call.1} parent=1 // pred_check
      %p191 = pneg %p190
    $region27: #{tpu_custom_call.1} parent=1 // pred_check_branch
      %193 = sbr.rel (%p191) target = $region29
    $region28: #{tpu_custom_call.1} parent=1 // pred_region
      %s194 = smul.u32 %s68, 256
      %v195 = vlaneseq
      %v196 = vand.u32 %v195, 127
      %v197 = vadd.s32 %v196, 128
      %v198 = vstv %s194
      %v199 = vadd.s32 %v198, %v196
      %v200 = vadd.s32 %v198, %v197
      %v201 = vld [vmem:[#allocation2] sm:$0x3]
      %vm202 = vcmp.lt.s32.totalorder %v199, 200
      %vm203 = vcmp.lt.s32.totalorder %v200, 200
      %v204 = vsel %vm202, %v171, 0.0
      %v205 = vsel %vm203, %v172, 0.0
      %v208 = vrot.slane %v205, 7
      %vm209 = vcmask 1040384
      %v210 = vsel %vm209, %v204, %v208
      %v212 = vadd.f32 %v201, %v210
      %v213 = vlaneseq
      %vm214 = vcmp.ge.s32.totalorder %v213, 0
      %vm215 = vcmp.lt.s32.totalorder %v213, 256
      %vm216 = vmand %vm214, %vm215
      %217 = vst.msk [vmem:[#allocation2] sm:$0x3] %vm216, %v212
    $region29: #{tpu_custom_call.1} parent=1 // pred_fallthru
      _
    // Predicated region
    $region30: #{tpu_custom_call.1} parent=1 // pred_check
      %p218 = pneg %p69
    $region31: #{tpu_custom_call.1} parent=1 // pred_check_branch
      %220 = sbr.rel (%p218) target = $region33
    $region32: #{tpu_custom_call.1} parent=1 // pred_region
      %v221 = vld [vmem:[#allocation2] sm:$0x3]
      %v223 = vperm.slane %v221, 0
      %v224 = vperm.slane %v221, 1
      %vm227 = vcmask 1040384
      %v228 = vsel %vm227, %v223, 0.0
      %v229 = vsel %vm227, %v224, 0.0
      %v230 = vadd.f32 %v228, %v229
      %231 = vadd.xlane.f32.xlu0 %v230
      %v232 = vpop.xlane.xlu0 %231
      %v233 = vrot.slane %v232, 4
      %v234 = vadd.f32 %v232, %v233
      %v235 = vrot.slane %v234, 2
      %v236 = vadd.f32 %v234, %v235
      %v237 = vrot.slane %v236, 1
      %v238 = vadd.f32 %v236, %v237
      %s239 = vtos %v238
      %s240 = scalar_lea.smem [#allocation6], 0
      %241 = sst [smem:[%s240]] %s239
    $region33: #{tpu_custom_call.1} parent=1 // pred_fallthru
      _
    // Predicated region
    $region34: #{tpu_custom_call.1} parent=1 // pred_check
      _
    $region35: #{tpu_custom_call.1} parent=1 // pred_check_branch
      %243 = sbr.rel (0) target = $region37
    $region36: #{tpu_custom_call.1} parent=1 // pred_region
      %245 = vsyncadd [#allocation5], 0
      %s247 = sshll.u32 %s3, 4
      %s248 = int_to_ptr.hbm [resolvable:$true] %s247
      %250 = dma.smem_to_hbm [#allocation6], 16, %s248, [#allocation5]
    $region37: #{tpu_custom_call.1} parent=1 // pred_fallthru
      _
    // Predicated region
    $region38: #{tpu_custom_call.1} parent=1 // pred_check
      _
    $region39: #{tpu_custom_call.1} parent=1 // pred_check_branch
      %252 = sbr.rel (0) target = $region41
    $region40: #{tpu_custom_call.1} parent=1 // pred_region
      %254 = dma.done [#allocation5], 16
    $region41: #{tpu_custom_call.1} parent=1 // pred_fallthru
      _
    %255 = sfence
    %256 = vsyncpa [#allocation4], 1
    %257 = vsyncpa [#allocation5], 1

</llo_original>
